<compile_context>
chip_gen: v7x
topology: tpu7x:2x2x1
jax: 0.10.0
libtpu: 0.0.40
codegen_flags: <defaults>
</compile_context>

<pallas_src>
import jax
import jax.numpy as jnp
from jax.experimental import pallas as pl
from jax.experimental.pallas import tpu as pltpu

EPS = 1e-5
_VMEM_LIMIT = 32 * 1024 * 1024      # well under v7x's 64 MiB physical VMEM
_TILE_HW_TARGET = 4096              # v7x: >=4096 recommended; fine on v6e/v5e as well


def _round_up(x, m):
    return (x + m - 1) // m * m


def _pick_tile_hw(hw, target=_TILE_HW_TARGET):
    """Largest lane-dense tile that tiles HW exactly (no padding, unmasked full-width stores)."""
    if hw <= target:
        return hw
    t = (target // 128) * 128
    while t >= 128:
        if hw % t == 0:
            return t
        t -= 128
    # No multiple of 128 divides HW: take a full image's worth of patches per step.
    # Stem spatial dims are modest, so this still fits VMEM comfortably.
    return hw


def _stats_kernel(x_ref, w_ref, b_ref, s_ref, ss_ref):
    """Pass 1: per-(n, hw-tile) partial per-channel sum / sum-of-squares of relu6(W @ p + b)."""
    y = jnp.dot(w_ref[...], x_ref[0], preferred_element_type=jnp.float32) + b_ref[...]
    y = jnp.clip(y, 0.0, 6.0)                                   # (OCp, tile_hw)
    s_ref[0] = jnp.sum(y, axis=1, keepdims=True)                # (OCp, 1)
    ss_ref[0] = jnp.sum(y * y, axis=1, keepdims=True)


def _make_bn_kernel(oc):
    def kernel(x_ref, w_ref, b_ref, scale_ref, shift_ref, o_ref):
        """Pass 2: recompute relu6(W @ p + b), apply folded BN, store NCHW (real channels only)."""
        y = jnp.dot(w_ref[...], x_ref[0], preferred_element_type=jnp.float32) + b_ref[...]
        y = jnp.clip(y, 0.0, 6.0)
        y = y * scale_ref[...] + shift_ref[...]                 # (OCp, tile_hw)
        o_ref[0] = y[:oc, :]                                    # drop padded channels in-register
    return kernel


def stem_forward(x, conv_w, conv_b, bn_gamma, bn_beta, *, tile_hw=None):
    """x: (N, C, H, W) float32 NCHW.  Returns (N, OC, H//4, W//4) float32 NCHW."""
    N, C, H, W = x.shape
    OC = conv_w.shape[0]
    assert H % 4 == 0 and W % 4 == 0
    Hp, Wp = H // 4, W // 4
    HW = Hp * Wp
    K = C * 16
    M = N * HW
    OCp = _round_up(OC, 128)

    if tile_hw is None:
        tile_hw = _pick_tile_hw(HW)
    assert HW % tile_hw == 0
    num_t = HW // tile_hw

    # --- glue: im2col into per-image (K, HW) layout (k = (c, kh, kw), hw = (hp, wp)).
    # TODO(synk): fuse this relayout into the kernels (see header note).
    pt = x.reshape(N, C, Hp, 4, Wp, 4).transpose(0, 1, 3, 5, 2, 4).reshape(N, K, HW)
    w2 = jnp.pad(conv_w.reshape(OC, K), ((0, OCp - OC), (0, 0)))        # (OCp, K)
    b_col = jnp.pad(conv_b, (0, OCp - OC)).reshape(OCp, 1)              # (OCp, 1)

    common = pltpu.CompilerParams(
        dimension_semantics=("parallel", "parallel"),
        vmem_limit_bytes=_VMEM_LIMIT,
    )

    x_spec = pl.BlockSpec((1, K, tile_hw), lambda n, t: (n, 0, t))
    w_spec = pl.BlockSpec((OCp, K), lambda n, t: (0, 0))
    col_spec = pl.BlockSpec((OCp, 1), lambda n, t: (0, 0))

    # --- pass 1: per-tile channel sum / sum-of-squares (no y written to HBM)
    partial_s, partial_ss = pl.pallas_call(
        _stats_kernel,
        out_shape=(
            jax.ShapeDtypeStruct((N * num_t, OCp, 1), jnp.float32),
            jax.ShapeDtypeStruct((N * num_t, OCp, 1), jnp.float32),
        ),
        grid_spec=pltpu.PrefetchScalarGridSpec(
            num_scalar_prefetch=0,
            grid=(N, num_t),
            in_specs=[x_spec, w_spec, col_spec],
            out_specs=[
                pl.BlockSpec((1, OCp, 1), lambda n, t: (n * num_t + t, 0, 0)),
                pl.BlockSpec((1, OCp, 1), lambda n, t: (n * num_t + t, 0, 0)),
            ],
        ),
        compiler_params=common,
    )(pt, w2, b_col)

    # --- glue: reduce tiny per-tile stats, fold BN into per-channel scale/shift (128 floats)
    s = jnp.sum(partial_s, axis=(0, 2))                                  # (OCp,)
    ss = jnp.sum(partial_ss, axis=(0, 2))
    mean = s / float(M)
    var = ss / float(M) - mean * mean                                    # biased var (PyTorch training BN)
    inv_std = jax.lax.rsqrt(var + EPS)
    g_p = jnp.pad(bn_gamma, (0, OCp - OC))
    beta_p = jnp.pad(bn_beta, (0, OCp - OC))
    scale_col = (g_p * inv_std).reshape(OCp, 1)
    shift_col = (beta_p - mean * g_p * inv_std).reshape(OCp, 1)

    # --- pass 2: recompute GEMM + bias + ReLU6, apply folded BN, emit NCHW directly
    out = pl.pallas_call(
        _make_bn_kernel(OC),
        out_shape=jax.ShapeDtypeStruct((N, OC, HW), jnp.float32),
        grid_spec=pltpu.PrefetchScalarGridSpec(
            num_scalar_prefetch=0,
            grid=(N, num_t),
            in_specs=[x_spec, w_spec, col_spec, col_spec, col_spec],
            out_specs=pl.BlockSpec((1, OC, tile_hw), lambda n, t: (n, 0, t)),
        ),
        compiler_params=common,
    )(pt, w2, b_col, scale_col, shift_col)

    # metadata-only reshape (contiguous split of the last dim) -> NCHW
    return out.reshape(N, OC, Hp, Wp)


def stem_reference(x, conv_w, conv_b, bn_gamma, bn_beta):
    """Pure-JAX reference (PyTorch training-mode BN semantics)."""
    y = jax.lax.conv_general_dilated(
        x, conv_w, window_strides=(4, 4), padding="VALID",
        dimension_numbers=("NCHW", "OIHW", "NCHW"))
    y = y + conv_b[None, :, None, None]
    y = jnp.clip(y, 0.0, 6.0)
    mean = y.mean(axis=(0, 2, 3), keepdims=True)
    var = ((y - mean) ** 2).mean(axis=(0, 2, 3), keepdims=True)
    return (y - mean) / jnp.sqrt(var + EPS) * bn_gamma[None, :, None, None] + bn_beta[None, :, None, None]


if __name__ == "__main__":
    key = jax.random.PRNGKey(0)
    kx, kw, kb = jax.random.split(key, 3)

    N, C, H, W = 2, 4, 16, 16
    OC = 80

    x = jax.random.normal(kx, (N, C, H, W), dtype=jnp.float32)
    conv_w = jax.random.normal(kw, (OC, C, 4, 4), dtype=jnp.float32) * 0.1
    conv_b = jax.random.normal(kb, (OC,), dtype=jnp.float32) * 0.1
    bn_gamma = jnp.ones((OC,), dtype=jnp.float32)   # PyTorch BatchNorm default init
    bn_beta = jnp.zeros((OC,), dtype=jnp.float32)

    out = stem_forward(x, conv_w, conv_b, bn_gamma, bn_beta)
    out = jax.block_until_ready(out)

    ref = stem_reference(x, conv_w, conv_b, bn_gamma, bn_beta)
    assert out.shape == (N, OC, H // 4, W // 4), out.shape
    assert jnp.allclose(out, ref, rtol=1e-4, atol=1e-4), float(jnp.max(jnp.abs(out - ref)))

    print("KERNEL_OK")
</pallas_src>

<mosaic_0001>
module attributes {stable_mosaic.version = 11 : i64} {
  func.func @_stats_kernel(%arg0: i32, %arg1: i32, %arg2: memref<1x64x16xf32, #tpu.memory_space<vmem>>, %arg3: memref<128x64xf32, #tpu.memory_space<vmem>>, %arg4: memref<128x1xf32, #tpu.memory_space<vmem>>, %arg5: memref<1x128x1xf32, #tpu.memory_space<vmem>>, %arg6: memref<1x128x1xf32, #tpu.memory_space<vmem>>) attributes {dimension_semantics = [#tpu.dimension_semantics<parallel>, #tpu.dimension_semantics<parallel>], iteration_bounds = array<i64: 2, 1>, scalar_prefetch = 0 : i64, scratch_operands = 0 : i64, tpu.core_type = #tpu.core_type<tc>, window_params = [{transform_indices = @transform_0, window_bounds = array<i64: 1, 64, 16>}, {pipeline_mode = #tpu.pipeline_mode<synchronous>, transform_indices = @transform_1, window_bounds = array<i64: 128, 64>}, {pipeline_mode = #tpu.pipeline_mode<synchronous>, transform_indices = @transform_2, window_bounds = array<i64: 128, 1>}, {transform_indices = @transform_3, window_bounds = array<i64: 1, 128, 1>}, {transform_indices = @transform_4, window_bounds = array<i64: 1, 128, 1>}]} {
    %c0 = arith.constant 0 : index
    %c0_0 = arith.constant 0 : index
    %0 = vector.load %arg3[%c0, %c0_0] : memref<128x64xf32, #tpu.memory_space<vmem>>, vector<128x64xf32>
    %c0_1 = arith.constant 0 : index
    %c0_2 = arith.constant 0 : index
    %c0_3 = arith.constant 0 : index
    %1 = vector.load %arg2[%c0_1, %c0_2, %c0_3] : memref<1x64x16xf32, #tpu.memory_space<vmem>>, vector<1x64x16xf32>
    %2 = vector.shape_cast %1 : vector<1x64x16xf32> to vector<64x16xf32>
    %cst = arith.constant dense<0.000000e+00> : vector<128x16xf32>
    %3 = tpu.matmul %0, %2, %cst {dimension_numbers = #tpu.dot_dimension_numbers<[1], [0], [0], [1], [0, 0, 1, 1], [], []>} : vector<128x64xf32>, vector<64x16xf32>, vector<128x16xf32> -> vector<128x16xf32>
    %c0_4 = arith.constant 0 : index
    %c0_5 = arith.constant 0 : index
    %4 = vector.load %arg4[%c0_4, %c0_5] : memref<128x1xf32, #tpu.memory_space<vmem>>, vector<128x1xf32>
    %5 = vector.broadcast %4 : vector<128x1xf32> to vector<128x16xf32>
    %6 = arith.addf %3, %5 : vector<128x16xf32>
    %cst_6 = arith.constant 0.000000e+00 : f32
    %cst_7 = arith.constant 6.000000e+00 : f32
    %7 = vector.broadcast %cst_6 : f32 to vector<128x16xf32>
    %8 = arith.maximumf %7, %6 : vector<128x16xf32>
    %9 = vector.broadcast %cst_7 : f32 to vector<128x16xf32>
    %10 = arith.minimumf %9, %8 : vector<128x16xf32>
    %cst_8 = arith.constant dense<0.000000e+00> : vector<128xf32>
    %11 = vector.multi_reduction <add>, %10, %cst_8 [1] : vector<128x16xf32> to vector<128xf32>
    %12 = vector.shape_cast %11 : vector<128xf32> to vector<128x1xf32>
    %c0_9 = arith.constant 0 : index
    %c0_10 = arith.constant 0 : index
    %c0_11 = arith.constant 0 : index
    %13 = vector.load %arg5[%c0_9, %c0_10, %c0_11] : memref<1x128x1xf32, #tpu.memory_space<vmem>>, vector<1x128x1xf32>
    %14 = vector.shape_cast %13 : vector<1x128x1xf32> to vector<128x1xf32>
    %15 = vector.shape_cast %12 : vector<128x1xf32> to vector<1x128x1xf32>
    tpu.vector_store %arg5[%c0_9, %c0_10, %c0_11], %15 {strides = array<i32>} : memref<1x128x1xf32, #tpu.memory_space<vmem>>, vector<1x128x1xf32>,
    %16 = arith.mulf %10, %10 : vector<128x16xf32>
    %cst_12 = arith.constant dense<0.000000e+00> : vector<128xf32>
    %17 = vector.multi_reduction <add>, %16, %cst_12 [1] : vector<128x16xf32> to vector<128xf32>
    %18 = vector.shape_cast %17 : vector<128xf32> to vector<128x1xf32>
    %c0_13 = arith.constant 0 : index
    %c0_14 = arith.constant 0 : index
    %c0_15 = arith.constant 0 : index
    %19 = vector.load %arg6[%c0_13, %c0_14, %c0_15] : memref<1x128x1xf32, #tpu.memory_space<vmem>>, vector<1x128x1xf32>
    %20 = vector.shape_cast %19 : vector<1x128x1xf32> to vector<128x1xf32>
    %21 = vector.shape_cast %18 : vector<128x1xf32> to vector<1x128x1xf32>
    tpu.vector_store %arg6[%c0_13, %c0_14, %c0_15], %21 {strides = array<i32>} : memref<1x128x1xf32, #tpu.memory_space<vmem>>, vector<1x128x1xf32>,
    return
  }
  func.func @transform_0(%arg0: i32, %arg1: i32) -> (i32, i32, i32) {
    %c0_i32 = arith.constant 0 : i32
    %c0_i32_0 = arith.constant 0 : i32
    return %arg0, %c0_i32, %arg1 : i32, i32, i32
  }
  func.func @transform_1(%arg0: i32, %arg1: i32) -> (i32, i32) {
    %c0_i32 = arith.constant 0 : i32
    %c0_i32_0 = arith.constant 0 : i32
    %c0_i32_1 = arith.constant 0 : i32
    return %c0_i32, %c0_i32_0 : i32, i32
  }
  func.func @transform_2(%arg0: i32, %arg1: i32) -> (i32, i32) {
    %c0_i32 = arith.constant 0 : i32
    %c0_i32_0 = arith.constant 0 : i32
    %c0_i32_1 = arith.constant 0 : i32
    return %c0_i32, %c0_i32_0 : i32, i32
  }
  func.func @transform_3(%arg0: i32, %arg1: i32) -> (i32, i32, i32) {
    %c1_i32 = arith.constant 1 : i32
    %0 = arith.muli %arg0, %c1_i32 : i32
    %1 = arith.addi %0, %arg1 : i32
    %c0_i32 = arith.constant 0 : i32
    %c0_i32_0 = arith.constant 0 : i32
    %c0_i32_1 = arith.constant 0 : i32
    return %1, %c0_i32, %c0_i32_0 : i32, i32, i32
  }
  func.func @transform_4(%arg0: i32, %arg1: i32) -> (i32, i32, i32) {
    %c1_i32 = arith.constant 1 : i32
    %0 = arith.muli %arg0, %c1_i32 : i32
    %1 = arith.addi %0, %arg1 : i32
    %c0_i32 = arith.constant 0 : i32
    %c0_i32_0 = arith.constant 0 : i32
    %c0_i32_1 = arith.constant 0 : i32
    return %1, %c0_i32, %c0_i32_0 : i32, i32, i32
  }
}

</mosaic_0001>

<llo_original>
// kernel: tpu_custom_call.1
$region0: #{tpu_custom_call.1}
  #allocation0 [shape = 'u32[]', space=smem, size = 0x4, offset = 0x4, fixed_abs, tag = 'smem constant byte address 0x4 - core index']
  #allocation1 [shape = 'u32[144,128]{1,0:T(1,128)}', space=vmem, size = 0x12000, scoped, tag = 'internal scratch']
  %s0 = inlined_call_operand.vmem [shape: f32[2,64,16], index: 0, kind: input, shape index: {}]
  %s1 = inlined_call_operand.vmem [shape: f32[128,64], index: 1, kind: input, shape index: {}]
  %s2 = inlined_call_operand.vmem [shape: f32[128,1], index: 2, kind: input, shape index: {}]
  %s3 = inlined_call_operand.vmem [shape: f32[2,128,1], index: 3, kind: output, shape index: {0}]
  %s4 = inlined_call_operand.vmem [shape: f32[2,128,1], index: 4, kind: output, shape index: {1}]
  %5 = xla_tuple %s3, %s4
  %s6 = sld [smem:[#allocation0]]
  $region53: #{tpu_custom_call.1} parent=0
    _
  %s8 = ssub.s32 1, %s6
  %s9 = scalar_select 0, %s8, %s6
  loop: start=0, step=1, limit=4
  $region2: #{tpu_custom_call.1} parent=0 // loop_pre_header
    _
  $region3: #{tpu_custom_call.1} parent=0 // loop_header
    %s11 = sphi 0, %s15
    %p12 = scmp.ge.s32.totalorder %s11, 4
    %s18 = sphi 0, %s30
    %s19 = sphi 0, %s26
    %s20 = sphi 0, %s18
    %s21 = sphi 0, %s19
    %s22 = sphi 0, %s20
    %s23 = sphi 0, %s21
    %s35 = sphi 0, %s37
    %s38 = sphi 0, %s35
    %s39 = sphi 0, %s38
    %s55 = sphi 0, %s39
    %s59 = sphi 0, %s59
    %s61 = sphi 0, %s59
    %s62 = sphi 0, %s61
    %s76 = sphi 0, %s62
    %s80 = sphi 0, %s80
    %s82 = sphi 0, %s80
    %s83 = sphi 0, %s82
    %s97 = sphi 0, %s83
    %s105 = sphi 0, %s107
    %s108 = sphi 0, %s105
    %s109 = sphi 0, %s108
    %s125 = sphi 0, %s109
    %s133 = sphi 0, %s135
    %s136 = sphi 0, %s133
    %s137 = sphi 0, %s136
    %s153 = sphi 0, %s137
  $region4: #{tpu_custom_call.1} parent=0 // loop_header_branch
    %14 = sbr.rel (%p12) target = $region8
  $region5: #{tpu_custom_call.1} parent=0 // loop_body
    %s16 = ssub.s32 %s11, 1
    %s17 = ssub.s32 %s11, 2
    %s24 = sadd.s32 1, %s19
    %p25 = scmp.ge.s32.totalorder %s24, 1
    %s26 = scalar_select %p25, 0, %s24
    %s27 = sadd.s32 1, %s18
    %s28 = scalar_select %p25, %s27, %s18
    %p29 = scmp.ge.s32.totalorder %s28, 2
    %s30 = scalar_select %p29, 0, %s28
    %s31 = ssub.s32 %s18, %s30
    %s32 = ssub.s32 %s19, %s26
    %s33 = sor.u32 %s31, %s32
    %p34 = scmp.eq.s32.totalorder %s33, 0
    %s36 = sadd.s32 %s35, 1
    %s37 = scalar_select %p34, %s35, %s36
    %p40 = pneg %p34
    %p41 = scmp.eq.s32.totalorder %s11, 1
    %p42 = por %p40, %p41
    %p43 = scmp.ne.s32.totalorder %s35, %s38
    %p44 = scmp.eq.s32.totalorder %s11, 0
    %p45 = por %p43, %p44
    %p46 = scmp.ne.s32.totalorder %s35, %s38
    %p47 = scmp.eq.s32.totalorder %s16, 1
    %p48 = por %p46, %p47
    %p49 = scmp.ne.s32.totalorder %s38, %s39
    %p50 = scmp.eq.s32.totalorder %s16, 0
    %p51 = por %p49, %p50
    %p52 = scmp.ne.s32.totalorder %s38, %s39
    %p53 = scmp.eq.s32.totalorder %s17, 1
    %p54 = por %p52, %p53
    %p56 = scmp.ne.s32.totalorder %s39, %s55
    %p57 = scmp.eq.s32.totalorder %s17, 0
    %p58 = por %p56, %p57
    %s60 = sadd.s32 %s59, 1
    %p63 = scmp.eq.s32.totalorder %s11, 1
    %p64 = scmp.ne.s32.totalorder %s59, %s61
    %p65 = scmp.eq.s32.totalorder %s11, 0
    %p66 = por %p64, %p65
    %p67 = scmp.ne.s32.totalorder %s59, %s61
    %p68 = scmp.eq.s32.totalorder %s16, 1
    %p69 = por %p67, %p68
    %p70 = scmp.ne.s32.totalorder %s61, %s62
    %p71 = scmp.eq.s32.totalorder %s16, 0
    %p72 = por %p70, %p71
    %p73 = scmp.ne.s32.totalorder %s61, %s62
    %p74 = scmp.eq.s32.totalorder %s17, 1
    %p75 = por %p73, %p74
    %p77 = scmp.ne.s32.totalorder %s62, %s76
    %p78 = scmp.eq.s32.totalorder %s17, 0
    %p79 = por %p77, %p78
    %s81 = sadd.s32 %s80, 1
    %p84 = scmp.eq.s32.totalorder %s11, 1
    %p85 = scmp.ne.s32.totalorder %s80, %s82
    %p86 = scmp.eq.s32.totalorder %s11, 0
    %p87 = por %p85, %p86
    %p88 = scmp.ne.s32.totalorder %s80, %s82
    %p89 = scmp.eq.s32.totalorder %s16, 1
    %p90 = por %p88, %p89
    %p91 = scmp.ne.s32.totalorder %s82, %s83
    %p92 = scmp.eq.s32.totalorder %s16, 0
    %p93 = por %p91, %p92
    %p94 = scmp.ne.s32.totalorder %s82, %s83
    %p95 = scmp.eq.s32.totalorder %s17, 1
    %p96 = por %p94, %p95
    %p98 = scmp.ne.s32.totalorder %s83, %s97
    %p99 = scmp.eq.s32.totalorder %s17, 0
    %p100 = por %p98, %p99
    %s101 = sadd.s32 %s18, %s19
    %s102 = sadd.s32 %s30, %s26
    %s103 = ssub.s32 %s101, %s102
    %p104 = scmp.eq.s32.totalorder %s103, 0
    %s106 = sadd.s32 %s105, 1
    %s107 = scalar_select %p104, %s105, %s106
    %p110 = pneg %p104
    %p111 = scmp.eq.s32.totalorder %s11, 1
    %p112 = por %p110, %p111
    %p113 = scmp.ne.s32.totalorder %s105, %s108
    %p114 = scmp.eq.s32.totalorder %s11, 0
    %p115 = por %p113, %p114
    %p116 = scmp.ne.s32.totalorder %s105, %s108
    %p117 = scmp.eq.s32.totalorder %s16, 1
    %p118 = por %p116, %p117
    %p119 = scmp.ne.s32.totalorder %s108, %s109
    %p120 = scmp.eq.s32.totalorder %s16, 0
    %p121 = por %p119, %p120
    %p122 = scmp.ne.s32.totalorder %s108, %s109
    %p123 = scmp.eq.s32.totalorder %s17, 1
    %p124 = por %p122, %p123
    %p126 = scmp.ne.s32.totalorder %s109, %s125
    %p127 = scmp.eq.s32.totalorder %s17, 0
    %p128 = por %p126, %p127
    %s129 = sadd.s32 %s18, %s19
    %s130 = sadd.s32 %s30, %s26
    %s131 = ssub.s32 %s129, %s130
    %p132 = scmp.eq.s32.totalorder %s131, 0
    %s134 = sadd.s32 %s133, 1
    %s135 = scalar_select %p132, %s133, %s134
    %p138 = pneg %p132
    %p139 = scmp.eq.s32.totalorder %s11, 1
    %p140 = por %p138, %p139
    %p141 = scmp.ne.s32.totalorder %s133, %s136
    %p142 = scmp.eq.s32.totalorder %s11, 0
    %p143 = por %p141, %p142
    %p144 = scmp.ne.s32.totalorder %s133, %s136
    %p145 = scmp.eq.s32.totalorder %s16, 1
    %p146 = por %p144, %p145
    %p147 = scmp.ne.s32.totalorder %s136, %s137
    %p148 = scmp.eq.s32.totalorder %s16, 0
    %p149 = por %p147, %p148
    %p150 = scmp.ne.s32.totalorder %s136, %s137
    %p151 = scmp.eq.s32.totalorder %s17, 1
    %p152 = por %p150, %p151
    %p154 = scmp.ne.s32.totalorder %s137, %s153
    %p155 = scmp.eq.s32.totalorder %s17, 0
    %p156 = por %p154, %p155
    %p157 = scmp.le.s32.totalorder 1, %s11
    %p158 = scmp.lt.s32.totalorder %s11, 3
    %p159 = pnand %p157, %p158
    %p160 = pneg %p159
    // Predicated region
    $region9: #{tpu_custom_call.1} parent=5 // pred_check
      _
    $region10: #{tpu_custom_call.1} parent=5 // pred_check_branch
      %162 = sbr.rel (%p159) target = $region12
    $region11: #{tpu_custom_call.1} parent=5 // pred_region
      %s163 = ssub.s32 %s11, 1
      // Predicated region
      $region13: #{tpu_custom_call.1} parent=11 // pred_check
        %p164 = pneg %p72
      $region14: #{tpu_custom_call.1} parent=11 // pred_check_branch
        %166 = sbr.rel (%p164) target = $region16
      $region15: #{tpu_custom_call.1} parent=11 // pred_region
        _
      $region16: #{tpu_custom_call.1} parent=11 // pred_fallthru
        _
      // Predicated region
      $region17: #{tpu_custom_call.1} parent=11 // pred_check
        %p167 = pneg %p93
      $region18: #{tpu_custom_call.1} parent=11 // pred_check_branch
        %169 = sbr.rel (%p167) target = $region20
      $region19: #{tpu_custom_call.1} parent=11 // pred_region
        _
      $region20: #{tpu_custom_call.1} parent=11 // pred_fallthru
        _
    $region12: #{tpu_custom_call.1} parent=5 // pred_fallthru
      _
    %p170 = scmp.lt.s32.totalorder %s11, 2
    // Predicated region
    $region21: #{tpu_custom_call.1} parent=5 // pred_check
      %p171 = pneg %p170
    $region22: #{tpu_custom_call.1} parent=5 // pred_check_branch
      %173 = sbr.rel (%p171) target = $region24
    $region23: #{tpu_custom_call.1} parent=5 // pred_region
      // Predicated region
      $region25: #{tpu_custom_call.1} parent=23 // pred_check
        %p174 = pneg %p45
      $region26: #{tpu_custom_call.1} parent=23 // pred_check_branch
        %176 = sbr.rel (%p174) target = $region28
      $region27: #{tpu_custom_call.1} parent=23 // pred_region
        %p177 = scmp.lt.s32.totalorder %s18, 1
        %s178 = scalar_select %p177, %s18, 1
        %p179 = scmp.lt.s32.totalorder %s19, 0
        %s180 = scalar_select %p179, %s19, 0
        %s181 = smul.addr %s178, 8
        %s182 = sadd.s32 %s180, %s181
        %s183 = smul.addr %s182, 8
        %s184 = scalar_lea.vmem %s0, %s183
      $region28: #{tpu_custom_call.1} parent=23 // pred_fallthru
        _
    $region24: #{tpu_custom_call.1} parent=5 // pred_fallthru
      _
    %p185 = scmp.le.s32.totalorder 1, %s11
    %p186 = scmp.lt.s32.totalorder %s11, 3
    %p187 = pnand %p185, %p186
    %p188 = pneg %p187
    // Predicated region
    $region29: #{tpu_custom_call.1} parent=5 // pred_check
      _
    $region30: #{tpu_custom_call.1} parent=5 // pred_check_branch
      %190 = sbr.rel (%p187) target = $region32
    $region31: #{tpu_custom_call.1} parent=5 // pred_region
      %s191 = ssub.s32 %s11, 1
      %p192 = scmp.lt.s32.totalorder %s20, 1
      %s193 = scalar_select %p192, %s20, 1
      %p194 = scmp.lt.s32.totalorder %s21, 0
      %s195 = scalar_select %p194, %s21, 0
      %s196 = smul.addr %s193, 8
      %s197 = sadd.s32 %s195, %s196
      %s198 = smul.addr %s197, 8
      %s199 = scalar_lea.vmem %s0, %s198
      %p200 = pneg %p51
      %p201 = pneg %p48
      %p202 = pneg %p72
      %p203 = pneg %p69
      %p204 = pneg %p93
      %p205 = pneg %p90
      %p206 = pneg %p121
      %p207 = pneg %p118
      %s208 = sadd.s32 %s20, %s21
      %p209 = scmp.lt.s32.totalorder %s208, 1
      %s210 = scalar_select %p209, %s208, 1
      %s211 = smul.addr %s210, 16
      %s212 = smul.addr %s211, 8
      %s213 = scalar_lea.vmem %s3, %s212
      %p214 = pneg %p149
      %p215 = pneg %p146
      %s216 = sadd.s32 %s20, %s21
      %p217 = scmp.lt.s32.totalorder %s216, 1
      %s218 = scalar_select %p217, %s216, 1
      %s219 = smul.addr %s218, 16
      %s220 = smul.addr %s219, 8
      %s221 = scalar_lea.vmem %s4, %s220
      %p222 = scmp.lt.s32.totalorder %s20, 1
      %s223 = scalar_select %p222, %s20, 1
      %p224 = scmp.lt.s32.totalorder %s21, 0
      %s225 = scalar_select %p224, %s21, 0
      %s226 = smul.addr %s223, 8
      %s227 = sadd.s32 %s225, %s226
      %s228 = smul.addr %s227, 8
      %s229 = scalar_lea.vmem %s0, %s228
      %s230 = sadd.s32 %s20, %s21
      %p231 = scmp.lt.s32.totalorder %s230, 1
      %s232 = scalar_select %p231, %s230, 1
      %s233 = smul.addr %s232, 16
      %s234 = smul.addr %s233, 8
      %s235 = scalar_lea.vmem %s3, %s234
      %s236 = sadd.s32 %s20, %s21
      %s237 = sadd.s32 %s20, %s21
      %p238 = scmp.lt.s32.totalorder %s237, 1
      %s239 = scalar_select %p238, %s237, 1
      %s240 = smul.addr %s239, 16
      %s241 = smul.addr %s240, 8
      %s242 = scalar_lea.vmem %s4, %s241
      %s243 = sadd.s32 %s20, %s21
      %v244 = vld [vmem:[%s1] sm:$0xff]
      %v245 = vld [vmem:[%s1 + $0x8] sm:$0xff]
      %v246 = vld [vmem:[%s1 + $0x10] sm:$0xff]
      %v247 = vld [vmem:[%s1 + $0x18] sm:$0xff]
      %v248 = vld [vmem:[%s1 + $0x20] sm:$0xff]
      %v249 = vld [vmem:[%s1 + $0x28] sm:$0xff]
      %v250 = vld [vmem:[%s1 + $0x30] sm:$0xff]
      %v251 = vld [vmem:[%s1 + $0x38] sm:$0xff]
      %v252 = vld [vmem:[%s1 + $0x40] sm:$0xff]
      %v253 = vld [vmem:[%s1 + $0x48] sm:$0xff]
      %v254 = vld [vmem:[%s1 + $0x50] sm:$0xff]
      %v255 = vld [vmem:[%s1 + $0x58] sm:$0xff]
      %v256 = vld [vmem:[%s1 + $0x60] sm:$0xff]
      %v257 = vld [vmem:[%s1 + $0x68] sm:$0xff]
      %v258 = vld [vmem:[%s1 + $0x70] sm:$0xff]
      %v259 = vld [vmem:[%s1 + $0x78] sm:$0xff]
      %v260 = vld [vmem:[%s229] sm:$0xff]
      %v261 = vld [vmem:[%s229 + $0x8] sm:$0xff]
      %v262 = vld [vmem:[%s229 + $0x10] sm:$0xff]
      %v263 = vld [vmem:[%s229 + $0x18] sm:$0xff]
      %v264 = vld [vmem:[%s229 + $0x20] sm:$0xff]
      %v265 = vld [vmem:[%s229 + $0x28] sm:$0xff]
      %v266 = vld [vmem:[%s229 + $0x30] sm:$0xff]
      %v267 = vld [vmem:[%s229 + $0x38] sm:$0xff]
      %v268 = vld [vmem:[%s2] sm:$0xff]
      %v269 = vld [vmem:[%s2 + $0x8] sm:$0xff]
      %v270 = vld [vmem:[%s2 + $0x10] sm:$0xff]
      %v271 = vld [vmem:[%s2 + $0x18] sm:$0xff]
      %v272 = vld [vmem:[%s2 + $0x20] sm:$0xff]
      %v273 = vld [vmem:[%s2 + $0x28] sm:$0xff]
      %v274 = vld [vmem:[%s2 + $0x30] sm:$0xff]
      %v275 = vld [vmem:[%s2 + $0x38] sm:$0xff]
      %v276 = vld [vmem:[%s2 + $0x40] sm:$0xff]
      %v277 = vld [vmem:[%s2 + $0x48] sm:$0xff]
      %v278 = vld [vmem:[%s2 + $0x50] sm:$0xff]
      %v279 = vld [vmem:[%s2 + $0x58] sm:$0xff]
      %v280 = vld [vmem:[%s2 + $0x60] sm:$0xff]
      %v281 = vld [vmem:[%s2 + $0x68] sm:$0xff]
      %v282 = vld [vmem:[%s2 + $0x70] sm:$0xff]
      %v283 = vld [vmem:[%s2 + $0x78] sm:$0xff]
      %285 = vset.pattern.permute.xlu0 0
      %286 = vperm.xlu0 %285, %v268
      %v287 = vpop.permute.xlu0 %286
      %290 = vset.pattern.permute.xlu0 0
      %291 = vperm.xlu0 %290, %v269
      %v292 = vpop.permute.xlu0 %291
      %295 = vset.pattern.permute.xlu0 0
      %296 = vperm.xlu0 %295, %v270
      %v297 = vpop.permute.xlu0 %296
      %300 = vset.pattern.permute.xlu0 0
      %301 = vperm.xlu0 %300, %v271
      %v302 = vpop.permute.xlu0 %301
      %305 = vset.pattern.permute.xlu0 0
      %306 = vperm.xlu0 %305, %v272
      %v307 = vpop.permute.xlu0 %306
      %310 = vset.pattern.permute.xlu0 0
      %311 = vperm.xlu0 %310, %v273
      %v312 = vpop.permute.xlu0 %311
      %315 = vset.pattern.permute.xlu0 0
      %316 = vperm.xlu0 %315, %v274
      %v317 = vpop.permute.xlu0 %316
      %320 = vset.pattern.permute.xlu0 0
      %321 = vperm.xlu0 %320, %v275
      %v322 = vpop.permute.xlu0 %321
      %325 = vset.pattern.permute.xlu0 0
      %326 = vperm.xlu0 %325, %v276
      %v327 = vpop.permute.xlu0 %326
      %330 = vset.pattern.permute.xlu0 0
      %331 = vperm.xlu0 %330, %v277
      %v332 = vpop.permute.xlu0 %331
      %335 = vset.pattern.permute.xlu0 0
      %336 = vperm.xlu0 %335, %v278
      %v337 = vpop.permute.xlu0 %336
      %340 = vset.pattern.permute.xlu0 0
      %341 = vperm.xlu0 %340, %v279
      %v342 = vpop.permute.xlu0 %341
      %345 = vset.pattern.permute.xlu0 0
      %346 = vperm.xlu0 %345, %v280
      %v347 = vpop.permute.xlu0 %346
      %350 = vset.pattern.permute.xlu0 0
      %351 = vperm.xlu0 %350, %v281
      %v352 = vpop.permute.xlu0 %351
      %355 = vset.pattern.permute.xlu0 0
      %356 = vperm.xlu0 %355, %v282
      %v357 = vpop.permute.xlu0 %356
      %360 = vset.pattern.permute.xlu0 0
      %361 = vperm.xlu0 %360, %v283
      %v362 = vpop.permute.xlu0 %361
      %vm364 = vcmask 523264
      %v366 = vsel %vm364, %v244, 0
      %v369 = vsel %vm364, %v245, 0
      %v372 = vsel %vm364, %v246, 0
      %v375 = vsel %vm364, %v247, 0
      %v378 = vsel %vm364, %v248, 0
      %v381 = vsel %vm364, %v249, 0
      %v384 = vsel %vm364, %v250, 0
      %v387 = vsel %vm364, %v251, 0
      %v390 = vsel %vm364, %v252, 0
      %v393 = vsel %vm364, %v253, 0
      %v396 = vsel %vm364, %v254, 0
      %v399 = vsel %vm364, %v255, 0
      %v402 = vsel %vm364, %v256, 0
      %v405 = vsel %vm364, %v257, 0
      %v408 = vsel %vm364, %v258, 0
      %v411 = vsel %vm364, %v259, 0
      %413 = vmatprep.subr.mxu0 0.0
      %414 = vmatpush1.msra.mxu0 %v260
      %415 = vmatprep.subr.mxu0 0.0
      %416 = vmatpush1.msra.mxu0 %v261
      %417 = vmatprep.subr.mxu0 0.0
      %418 = vmatpush1.msra.mxu0 %v262
      %419 = vmatprep.subr.mxu0 0.0
      %420 = vmatpush1.msra.mxu0 %v263
      %421 = vmatprep.subr.mxu0 0.0
      %422 = vmatpush1.msra.mxu0 %v264
      %423 = vmatprep.subr.mxu0 0.0
      %424 = vmatpush1.msra.mxu0 %v265
      %425 = vmatprep.subr.mxu0 0.0
      %426 = vmatpush1.msra.mxu0 %v266
      %427 = vmatprep.subr.mxu0 0.0
      %428 = vmatpush1.msra.mxu0 %v267
      %429 = vmatprep.subr.mxu0 0.0
      %430 = vmatpush1.msra.mxu0 0.0
      %431 = vmatprep.subr.mxu0 0.0
      %432 = vmatpush1.msra.mxu0 0.0
      %433 = vmatprep.subr.mxu0 0.0
      %434 = vmatpush1.msra.mxu0 0.0
      %435 = vmatprep.subr.mxu0 0.0
      %436 = vmatpush1.msra.mxu0 0.0
      %437 = vmatprep.subr.mxu0 0.0
      %438 = vmatpush1.msra.mxu0 0.0
      %439 = vmatprep.subr.mxu0 0.0
      %440 = vmatpush1.msra.mxu0 0.0
      %441 = vmatprep.subr.mxu0 0.0
      %442 = vmatpush1.msra.mxu0 0.0
      %443 = vmatprep.subr.mxu0 0.0
      %444 = vmatpush1.msra.mxu0 0.0
      %445 = vmatprep.subr.mxu0 0.0
      %446 = vmatpush1.msra.mxu0 0.0
      %447 = vmatprep.subr.mxu0 0.0
      %448 = vmatpush1.msra.mxu0 0.0
      %449 = vmatprep.subr.mxu0 0.0
      %450 = vmatpush1.msra.mxu0 0.0
      %451 = vmatprep.subr.mxu0 0.0
      %452 = vmatpush1.msra.mxu0 0.0
      %453 = vmatprep.subr.mxu0 0.0
      %454 = vmatpush1.msra.mxu0 0.0
      %455 = vmatprep.subr.mxu0 0.0
      %456 = vmatpush1.msra.mxu0 0.0
      %457 = vmatprep.subr.mxu0 0.0
      %458 = vmatpush1.msra.mxu0 0.0
      %459 = vmatprep.subr.mxu0 0.0
      %460 = vmatpush1.msra.mxu0 0.0
      %461 = vmatprep.subr.mxu0 0.0
      %462 = vmatpush1.msra.mxu0 0.0
      %463 = vmatprep.subr.mxu0 0.0
      %464 = vmatpush1.msra.mxu0 0.0
      %465 = vmatprep.subr.mxu0 0.0
      %466 = vmatpush1.msra.mxu0 0.0
      %467 = vmatprep.subr.mxu0 0.0
      %468 = vmatpush1.msra.mxu0 0.0
      %469 = vmatprep.subr.mxu0 0.0
      %470 = vmatpush1.msra.mxu0 0.0
      %471 = vmatprep.subr.mxu0 0.0
      %472 = vmatpush1.msra.mxu0 0.0
      %473 = vmatprep.subr.mxu0 0.0
      %474 = vmatpush1.msra.mxu0 0.0
      %475 = vmatprep.subr.mxu0 0.0
      %476 = vmatpush1.msra.mxu0 0.0
      %477 = vmatprep.mubr.f32.mxu0 0.0
      %478 = vmatmul.mubr.f32.gmra.mrb[0].mxu0 %v366
      %v479 = vpop.f32.mrb[0].mxu0
      %v480 = vadd.f32 %v287, %v479
      %v481 = vpop.f32.mrb[0].mxu0
      %482 = vmatprep.mubr.f32.mxu0 0.0
      %483 = vmatmul.mubr.f32.gmra.mrb[0].mxu0 %v369
      %v484 = vpop.f32.mrb[0].mxu0
      %v485 = vadd.f32 %v292, %v484
      %v486 = vpop.f32.mrb[0].mxu0
      %487 = vmatprep.mubr.f32.mxu0 0.0
      %488 = vmatmul.mubr.f32.gmra.mrb[0].mxu0 %v372
      %v489 = vpop.f32.mrb[0].mxu0
      %v490 = vadd.f32 %v297, %v489
      %v491 = vpop.f32.mrb[0].mxu0
      %492 = vmatprep.mubr.f32.mxu0 0.0
      %493 = vmatmul.mubr.f32.gmra.mrb[0].mxu0 %v375
      %v494 = vpop.f32.mrb[0].mxu0
      %v495 = vadd.f32 %v302, %v494
      %v496 = vpop.f32.mrb[0].mxu0
      %497 = vmatprep.mubr.f32.mxu0 0.0
      %498 = vmatmul.mubr.f32.gmra.mrb[0].mxu0 %v378
      %v499 = vpop.f32.mrb[0].mxu0
      %v500 = vadd.f32 %v307, %v499
      %v501 = vpop.f32.mrb[0].mxu0
      %502 = vmatprep.mubr.f32.mxu0 0.0
      %503 = vmatmul.mubr.f32.gmra.mrb[0].mxu0 %v381
      %v504 = vpop.f32.mrb[0].mxu0
      %v505 = vadd.f32 %v312, %v504
      %v506 = vpop.f32.mrb[0].mxu0
      %507 = vmatprep.mubr.f32.mxu0 0.0
      %508 = vmatmul.mubr.f32.gmra.mrb[0].mxu0 %v384
      %v509 = vpop.f32.mrb[0].mxu0
      %v510 = vadd.f32 %v317, %v509
      %v511 = vpop.f32.mrb[0].mxu0
      %512 = vmatprep.mubr.f32.mxu0 0.0
      %513 = vmatmul.mubr.f32.gmra.mrb[0].mxu0 %v387
      %v514 = vpop.f32.mrb[0].mxu0
      %v515 = vadd.f32 %v322, %v514
      %v516 = vpop.f32.mrb[0].mxu0
      %517 = vmatprep.mubr.f32.mxu0 0.0
      %518 = vmatmul.mubr.f32.gmra.mrb[0].mxu0 %v390
      %v519 = vpop.f32.mrb[0].mxu0
      %v520 = vadd.f32 %v327, %v519
      %v521 = vpop.f32.mrb[0].mxu0
      %522 = vmatprep.mubr.f32.mxu0 0.0
      %523 = vmatmul.mubr.f32.gmra.mrb[0].mxu0 %v393
      %v524 = vpop.f32.mrb[0].mxu0
      %v525 = vadd.f32 %v332, %v524
      %v526 = vpop.f32.mrb[0].mxu0
      %527 = vmatprep.mubr.f32.mxu0 0.0
      %528 = vmatmul.mubr.f32.gmra.mrb[0].mxu0 %v396
      %v529 = vpop.f32.mrb[0].mxu0
      %v530 = vadd.f32 %v337, %v529
      %v531 = vpop.f32.mrb[0].mxu0
      %532 = vmatprep.mubr.f32.mxu0 0.0
      %533 = vmatmul.mubr.f32.gmra.mrb[0].mxu0 %v399
      %v534 = vpop.f32.mrb[0].mxu0
      %v535 = vadd.f32 %v342, %v534
      %v536 = vpop.f32.mrb[0].mxu0
      %537 = vmatprep.mubr.f32.mxu0 0.0
      %538 = vmatmul.mubr.f32.gmra.mrb[0].mxu0 %v402
      %v539 = vpop.f32.mrb[0].mxu0
      %v540 = vadd.f32 %v347, %v539
      %v541 = vpop.f32.mrb[0].mxu0
      %542 = vmatprep.mubr.f32.mxu0 0.0
      %543 = vmatmul.mubr.f32.gmra.mrb[0].mxu0 %v405
      %v544 = vpop.f32.mrb[0].mxu0
      %v545 = vadd.f32 %v352, %v544
      %v546 = vpop.f32.mrb[0].mxu0
      %547 = vmatprep.mubr.f32.mxu0 0.0
      %548 = vmatmul.mubr.f32.gmra.mrb[0].mxu0 %v408
      %v549 = vpop.f32.mrb[0].mxu0
      %v550 = vadd.f32 %v357, %v549
      %v551 = vpop.f32.mrb[0].mxu0
      %552 = vmatprep.mubr.f32.mxu0 0.0
      %553 = vmatmul.mubr.f32.gmra.mrb[0].mxu0 %v411
      %v554 = vpop.f32.mrb[0].mxu0
      %v555 = vadd.f32 %v362, %v554
      %v556 = vpop.f32.mrb[0].mxu0
      %557 = vdwg.mxu0
      %v558 = vmax.f32 %v480, 0.0
      %v559 = vmax.f32 %v485, 0.0
      %v560 = vmax.f32 %v490, 0.0
      %v561 = vmax.f32 %v495, 0.0
      %v562 = vmax.f32 %v500, 0.0
      %v563 = vmax.f32 %v505, 0.0
      %v564 = vmax.f32 %v510, 0.0
      %v565 = vmax.f32 %v515, 0.0
      %v566 = vmax.f32 %v520, 0.0
      %v567 = vmax.f32 %v525, 0.0
      %v568 = vmax.f32 %v530, 0.0
      %v569 = vmax.f32 %v535, 0.0
      %v570 = vmax.f32 %v540, 0.0
      %v571 = vmax.f32 %v545, 0.0
      %v572 = vmax.f32 %v550, 0.0
      %v573 = vmax.f32 %v555, 0.0
      %v574 = vmin.f32 %v558, 6.0
      %v575 = vmin.f32 %v559, 6.0
      %v576 = vmin.f32 %v560, 6.0
      %v577 = vmin.f32 %v561, 6.0
      %v578 = vmin.f32 %v562, 6.0
      %v579 = vmin.f32 %v563, 6.0
      %v580 = vmin.f32 %v564, 6.0
      %v581 = vmin.f32 %v565, 6.0
      %v582 = vmin.f32 %v566, 6.0
      %v583 = vmin.f32 %v567, 6.0
      %v584 = vmin.f32 %v568, 6.0
      %v585 = vmin.f32 %v569, 6.0
      %v586 = vmin.f32 %v570, 6.0
      %v587 = vmin.f32 %v571, 6.0
      %v588 = vmin.f32 %v572, 6.0
      %v589 = vmin.f32 %v573, 6.0
      %vm590 = vcmask 130048
      %v591 = vsel %vm590, %v574, 0.0
      %592 = vadd.xlane.f32.xlu0 %v591
      %v593 = vpop.xlane.xlu0 %592
      %v594 = vsel %vm590, %v575, 0.0
      %595 = vadd.xlane.f32.xlu0 %v594
      %v596 = vpop.xlane.xlu0 %595
      %v597 = vsel %vm590, %v576, 0.0
      %598 = vadd.xlane.f32.xlu0 %v597
      %v599 = vpop.xlane.xlu0 %598
      %v600 = vsel %vm590, %v577, 0.0
      %601 = vadd.xlane.f32.xlu0 %v600
      %v602 = vpop.xlane.xlu0 %601
      %v603 = vsel %vm590, %v578, 0.0
      %604 = vadd.xlane.f32.xlu0 %v603
      %v605 = vpop.xlane.xlu0 %604
      %v606 = vsel %vm590, %v579, 0.0
      %607 = vadd.xlane.f32.xlu0 %v606
      %v608 = vpop.xlane.xlu0 %607
      %v609 = vsel %vm590, %v580, 0.0
      %610 = vadd.xlane.f32.xlu0 %v609
      %v611 = vpop.xlane.xlu0 %610
      %v612 = vsel %vm590, %v581, 0.0
      %613 = vadd.xlane.f32.xlu0 %v612
      %v614 = vpop.xlane.xlu0 %613
      %v615 = vsel %vm590, %v582, 0.0
      %616 = vadd.xlane.f32.xlu0 %v615
      %v617 = vpop.xlane.xlu0 %616
      %v618 = vsel %vm590, %v583, 0.0
      %619 = vadd.xlane.f32.xlu0 %v618
      %v620 = vpop.xlane.xlu0 %619
      %v621 = vsel %vm590, %v584, 0.0
      %622 = vadd.xlane.f32.xlu0 %v621
      %v623 = vpop.xlane.xlu0 %622
      %v624 = vsel %vm590, %v585, 0.0
      %625 = vadd.xlane.f32.xlu0 %v624
      %v626 = vpop.xlane.xlu0 %625
      %v627 = vsel %vm590, %v586, 0.0
      %628 = vadd.xlane.f32.xlu0 %v627
      %v629 = vpop.xlane.xlu0 %628
      %v630 = vsel %vm590, %v587, 0.0
      %631 = vadd.xlane.f32.xlu0 %v630
      %v632 = vpop.xlane.xlu0 %631
      %v633 = vsel %vm590, %v588, 0.0
      %634 = vadd.xlane.f32.xlu0 %v633
      %v635 = vpop.xlane.xlu0 %634
      %v636 = vsel %vm590, %v589, 0.0
      %637 = vadd.xlane.f32.xlu0 %v636
      %v638 = vpop.xlane.xlu0 %637
      %vm639 = vcmask 7168
      %640 = vst.msk [vmem:[%s235] sm:$0xff] %vm639, %v593
      %641 = vst.msk [vmem:[%s235 + $0x8] sm:$0xff] %vm639, %v596
      %642 = vst.msk [vmem:[%s235 + $0x10] sm:$0xff] %vm639, %v599
      %643 = vst.msk [vmem:[%s235 + $0x18] sm:$0xff] %vm639, %v602
      %644 = vst.msk [vmem:[%s235 + $0x20] sm:$0xff] %vm639, %v605
      %645 = vst.msk [vmem:[%s235 + $0x28] sm:$0xff] %vm639, %v608
      %646 = vst.msk [vmem:[%s235 + $0x30] sm:$0xff] %vm639, %v611
      %647 = vst.msk [vmem:[%s235 + $0x38] sm:$0xff] %vm639, %v614
      %648 = vst.msk [vmem:[%s235 + $0x40] sm:$0xff] %vm639, %v617
      %649 = vst.msk [vmem:[%s235 + $0x48] sm:$0xff] %vm639, %v620
      %650 = vst.msk [vmem:[%s235 + $0x50] sm:$0xff] %vm639, %v623
      %651 = vst.msk [vmem:[%s235 + $0x58] sm:$0xff] %vm639, %v626
      %652 = vst.msk [vmem:[%s235 + $0x60] sm:$0xff] %vm639, %v629
      %653 = vst.msk [vmem:[%s235 + $0x68] sm:$0xff] %vm639, %v632
      %654 = vst.msk [vmem:[%s235 + $0x70] sm:$0xff] %vm639, %v635
      %655 = vst.msk [vmem:[%s235 + $0x78] sm:$0xff] %vm639, %v638
      %v656 = vmul.f32 %v574, %v574
      %v657 = vmul.f32 %v575, %v575
      %v658 = vmul.f32 %v576, %v576
      %v659 = vmul.f32 %v577, %v577
      %v660 = vmul.f32 %v578, %v578
      %v661 = vmul.f32 %v579, %v579
      %v662 = vmul.f32 %v580, %v580
      %v663 = vmul.f32 %v581, %v581
      %v664 = vmul.f32 %v582, %v582
      %v665 = vmul.f32 %v583, %v583
      %v666 = vmul.f32 %v584, %v584
      %v667 = vmul.f32 %v585, %v585
      %v668 = vmul.f32 %v586, %v586
      %v669 = vmul.f32 %v587, %v587
      %v670 = vmul.f32 %v588, %v588
      %v671 = vmul.f32 %v589, %v589
      %v672 = vsel %vm590, %v656, 0.0
      %673 = vadd.xlane.f32.xlu0 %v672
      %v674 = vpop.xlane.xlu0 %673
      %v675 = vsel %vm590, %v657, 0.0
      %676 = vadd.xlane.f32.xlu0 %v675
      %v677 = vpop.xlane.xlu0 %676
      %v678 = vsel %vm590, %v658, 0.0
      %679 = vadd.xlane.f32.xlu0 %v678
      %v680 = vpop.xlane.xlu0 %679
      %v681 = vsel %vm590, %v659, 0.0
      %682 = vadd.xlane.f32.xlu0 %v681
      %v683 = vpop.xlane.xlu0 %682
      %v684 = vsel %vm590, %v660, 0.0
      %685 = vadd.xlane.f32.xlu0 %v684
      %v686 = vpop.xlane.xlu0 %685
      %v687 = vsel %vm590, %v661, 0.0
      %688 = vadd.xlane.f32.xlu0 %v687
      %v689 = vpop.xlane.xlu0 %688
      %v690 = vsel %vm590, %v662, 0.0
      %691 = vadd.xlane.f32.xlu0 %v690
      %v692 = vpop.xlane.xlu0 %691
      %v693 = vsel %vm590, %v663, 0.0
      %694 = vadd.xlane.f32.xlu0 %v693
      %v695 = vpop.xlane.xlu0 %694
      %v696 = vsel %vm590, %v664, 0.0
      %697 = vadd.xlane.f32.xlu0 %v696
      %v698 = vpop.xlane.xlu0 %697
      %v699 = vsel %vm590, %v665, 0.0
      %700 = vadd.xlane.f32.xlu0 %v699
      %v701 = vpop.xlane.xlu0 %700
      %v702 = vsel %vm590, %v666, 0.0
      %703 = vadd.xlane.f32.xlu0 %v702
      %v704 = vpop.xlane.xlu0 %703
      %v705 = vsel %vm590, %v667, 0.0
      %706 = vadd.xlane.f32.xlu0 %v705
      %v707 = vpop.xlane.xlu0 %706
      %v708 = vsel %vm590, %v668, 0.0
      %709 = vadd.xlane.f32.xlu0 %v708
      %v710 = vpop.xlane.xlu0 %709
      %v711 = vsel %vm590, %v669, 0.0
      %712 = vadd.xlane.f32.xlu0 %v711
      %v713 = vpop.xlane.xlu0 %712
      %v714 = vsel %vm590, %v670, 0.0
      %715 = vadd.xlane.f32.xlu0 %v714
      %v716 = vpop.xlane.xlu0 %715
      %v717 = vsel %vm590, %v671, 0.0
      %718 = vadd.xlane.f32.xlu0 %v717
      %v719 = vpop.xlane.xlu0 %718
      %720 = vst.msk [vmem:[%s242] sm:$0xff] %vm639, %v674
      %721 = vst.msk [vmem:[%s242 + $0x8] sm:$0xff] %vm639, %v677
      %722 = vst.msk [vmem:[%s242 + $0x10] sm:$0xff] %vm639, %v680
      %723 = vst.msk [vmem:[%s242 + $0x18] sm:$0xff] %vm639, %v683
      %724 = vst.msk [vmem:[%s242 + $0x20] sm:$0xff] %vm639, %v686
      %725 = vst.msk [vmem:[%s242 + $0x28] sm:$0xff] %vm639, %v689
      %726 = vst.msk [vmem:[%s242 + $0x30] sm:$0xff] %vm639, %v692
      %727 = vst.msk [vmem:[%s242 + $0x38] sm:$0xff] %vm639, %v695
      %728 = vst.msk [vmem:[%s242 + $0x40] sm:$0xff] %vm639, %v698
      %729 = vst.msk [vmem:[%s242 + $0x48] sm:$0xff] %vm639, %v701
      %730 = vst.msk [vmem:[%s242 + $0x50] sm:$0xff] %vm639, %v704
      %731 = vst.msk [vmem:[%s242 + $0x58] sm:$0xff] %vm639, %v707
      %732 = vst.msk [vmem:[%s242 + $0x60] sm:$0xff] %vm639, %v710
      %733 = vst.msk [vmem:[%s242 + $0x68] sm:$0xff] %vm639, %v713
      %734 = vst.msk [vmem:[%s242 + $0x70] sm:$0xff] %vm639, %v716
      %735 = vst.msk [vmem:[%s242 + $0x78] sm:$0xff] %vm639, %v719
      %s736 = sadd.s32 %s20, %s21
      %p737 = scmp.lt.s32.totalorder %s736, 1
      %s738 = scalar_select %p737, %s736, 1
      %s739 = smul.addr %s738, 16
      %s740 = smul.addr %s739, 8
      %s741 = scalar_lea.vmem %s3, %s740
      %s742 = sadd.s32 %s20, %s21
      %p743 = scmp.lt.s32.totalorder %s742, 1
      %s744 = scalar_select %p743, %s742, 1
      %s745 = smul.addr %s744, 16
      %s746 = smul.addr %s745, 8
      %s747 = scalar_lea.vmem %s4, %s746
      // Predicated region
      $region33: #{tpu_custom_call.1} parent=31 // pred_check
        %p748 = pneg %p118
      $region34: #{tpu_custom_call.1} parent=31 // pred_check_branch
        %750 = sbr.rel (%p748) target = $region36
      $region35: #{tpu_custom_call.1} parent=31 // pred_region
        %s751 = sadd.s32 %s20, %s21
      $region36: #{tpu_custom_call.1} parent=31 // pred_fallthru
        _
      // Predicated region
      $region37: #{tpu_custom_call.1} parent=31 // pred_check
        %p752 = pneg %p146
      $region38: #{tpu_custom_call.1} parent=31 // pred_check_branch
        %754 = sbr.rel (%p752) target = $region40
      $region39: #{tpu_custom_call.1} parent=31 // pred_region
        %s755 = sadd.s32 %s20, %s21
      $region40: #{tpu_custom_call.1} parent=31 // pred_fallthru
        _
    $region32: #{tpu_custom_call.1} parent=5 // pred_fallthru
      _
    %p756 = scmp.le.s32.totalorder 2, %s11
    // Predicated region
    $region41: #{tpu_custom_call.1} parent=5 // pred_check
      %p757 = pneg %p756
    $region42: #{tpu_custom_call.1} parent=5 // pred_check_branch
      %759 = sbr.rel (%p757) target = $region44
    $region43: #{tpu_custom_call.1} parent=5 // pred_region
      %s760 = ssub.s32 %s11, 2
      // Predicated region
      $region45: #{tpu_custom_call.1} parent=43 // pred_check
        %p761 = pneg %p124
      $region46: #{tpu_custom_call.1} parent=43 // pred_check_branch
        %763 = sbr.rel (%p761) target = $region48
      $region47: #{tpu_custom_call.1} parent=43 // pred_region
        %s764 = sadd.s32 %s22, %s23
        %p765 = scmp.lt.s32.totalorder %s764, 1
        %s766 = scalar_select %p765, %s764, 1
        %s767 = smul.addr %s766, 16
        %s768 = smul.addr %s767, 8
        %s769 = scalar_lea.vmem %s3, %s768
      $region48: #{tpu_custom_call.1} parent=43 // pred_fallthru
        _
      // Predicated region
      $region49: #{tpu_custom_call.1} parent=43 // pred_check
        %p770 = pneg %p152
      $region50: #{tpu_custom_call.1} parent=43 // pred_check_branch
        %772 = sbr.rel (%p770) target = $region52
      $region51: #{tpu_custom_call.1} parent=43 // pred_region
        %s773 = sadd.s32 %s22, %s23
        %p774 = scmp.lt.s32.totalorder %s773, 1
        %s775 = scalar_select %p774, %s773, 1
        %s776 = smul.addr %s775, 16
        %s777 = smul.addr %s776, 8
        %s778 = scalar_lea.vmem %s4, %s777
      $region52: #{tpu_custom_call.1} parent=43 // pred_fallthru
        _
    $region44: #{tpu_custom_call.1} parent=5 // pred_fallthru
      _
  $region6: #{tpu_custom_call.1} parent=0 // loop_footer
    %s15 = sadd.s32 1, %s11
  $region7: #{tpu_custom_call.1} parent=0 // loop_footer_branch
    %10 = sbr.rel target = $region3
  $region8: #{tpu_custom_call.1} parent=0 // loop_exit
    _

</llo_original>
